<compile_context>
chip_gen: v7x
topology: tpu7x:2x2x1
jax: 0.10.0
libtpu: 0.0.40
codegen_flags: <defaults>
</compile_context>

<pallas_src>
import jax
import jax.numpy as jnp
from jax.experimental import pallas as pl
from jax.experimental.pallas import tpu as pltpu


def _attn_kernel(seqs_ref, mask_ref, w1_ref, b1_ref, wg_ref, bg_ref, out_ref):
    TB, S, E = seqs_ref.shape
    x3 = seqs_ref[...]                                        # [TB,S,E] stream dtype

    # h1: Linear(E,E) + tanh — ONE flat MXU matmul over all TB*S rows, f32 accum.
    x2 = x3.reshape(TB * S, E)
    h2 = jnp.tanh(
        jnp.dot(x2, w1_ref[...], preferred_element_type=jnp.float32)
        + b1_ref[...]                                         # [1,E] f32, broadcasts
    )                                                         # [TB*S,E] f32
    h3 = h2.reshape(TB, S, E)

    # gate_layer: Linear(E,1) as a VPU multiply + lane reduce (no batched M=1 matmul).
    wg = wg_ref[...].reshape(1, 1, E)                         # [1,1,E] f32
    g = jnp.sum(h3 * wg, axis=-1, keepdims=True) + bg_ref[0]  # [TB,S,1] f32
    g = g + mask_ref[...] * (-1000000000.0)                   # additive mask

    # softmax over the sequence (sublane) axis — exact normalization, f32.
    m = jnp.max(g, axis=1, keepdims=True)                     # [TB,1,1]
    e = jnp.exp(g - m)
    p = e / jnp.sum(e, axis=1, keepdims=True)                 # [TB,S,1] f32

    # weighted sum of the ORIGINAL seqs over S: VPU broadcast-mult + sublane reduce.
    out = jnp.sum(x3.astype(jnp.float32) * p, axis=1)         # [TB,E] f32
    out_ref[...] = out.astype(out_ref.dtype)


def attention_layer(seqs, w1, b1, wg, bg, seq_masks=None, *,
                    block_b=None, compute_dtype=jnp.bfloat16):
    """seqs: [B, S, E]; returns [B, E] = softmax-gated sum of seqs over S."""
    seqs = jnp.asarray(seqs)
    B, S, E = seqs.shape
    out_dtype = seqs.dtype
    cdt = jnp.dtype(compute_dtype) if compute_dtype is not None else out_dtype

    # mask kept as [B, S, 1] f32 (S on sublanes, matching the gate layout).
    if seq_masks is None:
        mask = jnp.zeros((B, S, 1), jnp.float32)
    else:
        mask = jnp.asarray(seq_masks, jnp.float32).reshape(B, S, 1)

    # Pad S to a multiple of 8 (full sublane tiles); padded positions fully masked.
    S_pad = -(-S // 8) * 8
    if S_pad != S:
        seqs = jnp.pad(seqs, ((0, 0), (0, S_pad - S), (0, 0)))
        mask = jnp.pad(mask, ((0, 0), (0, S_pad - S), (0, 0)), constant_values=1.0)
        S = S_pad

    stream_it = jnp.dtype(cdt).itemsize
    out_it = jnp.dtype(out_dtype).itemsize

    # ---- batch-tile selection -------------------------------------------------
    if block_b is not None:
        TB = max(1, min(int(block_b), B))
    else:
        TB = max(1, min(B, 512 // max(S, 1)))          # target ~512 MXU rows / step
        # prefer >= 4 grid steps (pipelining + both v7x TCs) once steps are >=256 rows
        while TB > 1 and -(-B // TB) < 4 and (TB // 2) * S >= 256:
            TB //= 2
    # VMEM budget: keep the double-buffered seqs block small (v7x scoped-VMEM safe).
    TB = min(TB, max(1, (4 * 1024 * 1024) // max(S * E * stream_it, 1)))
    # sublane-friendly batch tile for the lane-dense (TB, E) output block.
    sub = 16 if out_it == 2 else 8
    if TB > sub:
        TB = (TB // sub) * sub

    B_pad = pl.cdiv(B, TB) * TB
    if B_pad != B:
        pad = B_pad - B
        seqs = jnp.pad(seqs, ((0, pad), (0, 0), (0, 0)))   # zero rows, sliced off below
        mask = jnp.pad(mask, ((0, pad), (0, 0), (0, 0)))

    # PyTorch Linear stores weight as [out, in]; the kernel wants [in, out].
    seqs_c = seqs.astype(cdt)
    w1_t = jnp.asarray(w1).T.astype(cdt)                   # [E, E] streamed dtype
    b1_r = jnp.asarray(b1, jnp.float32).reshape(1, E)      # [1, E] f32
    wg_r = jnp.asarray(wg, jnp.float32).reshape(1, E)      # [1, E] f32
    bg_s = jnp.asarray(bg, jnp.float32).reshape(1)         # SMEM scalar

    grid_spec = pltpu.PrefetchScalarGridSpec(
        num_scalar_prefetch=0,
        grid=(B_pad // TB,),
        in_specs=[
            pl.BlockSpec((TB, S, E), lambda b: (b, 0, 0)),        # seqs
            pl.BlockSpec((TB, S, 1), lambda b: (b, 0, 0)),        # mask
            pl.BlockSpec((E, E), lambda b: (0, 0)),               # w1^T (loop-invariant)
            pl.BlockSpec((1, E), lambda b: (0, 0)),               # b1
            pl.BlockSpec((1, E), lambda b: (0, 0)),               # wg row
            pl.BlockSpec(memory_space=pltpu.MemorySpace.SMEM),    # bg scalar
        ],
        out_specs=pl.BlockSpec((TB, E), lambda b: (b, 0)),
    )

    cost = pl.CostEstimate(
        flops=int(2 * B_pad * S * E * E + 4 * B_pad * S * E),
        transcendentals=int(B_pad * S * E + B_pad * S),
        bytes_accessed=int(B_pad * S * E * stream_it + E * E * stream_it
                           + B_pad * S * 4 + B_pad * E * out_it + 3 * E * 4),
    )

    out = pl.pallas_call(
        _attn_kernel,
        out_shape=jax.ShapeDtypeStruct((B_pad, E), out_dtype),
        grid_spec=grid_spec,
        compiler_params=pltpu.CompilerParams(
            dimension_semantics=("parallel",),
            vmem_limit_bytes=32 * 1024 * 1024,
        ),
        cost_estimate=cost,
    )(seqs_c, mask, w1_t, b1_r, wg_r, bg_s)

    return out[:B] if B_pad != B else out


def _reference(seqs, w1, b1, wg, bg, seq_masks=None):
    seqs = jnp.asarray(seqs, jnp.float32)
    h = jnp.tanh(jnp.einsum("bse,oe->bso", seqs, w1) + b1)
    gates = (jnp.einsum("bse,oe->bso", h, wg) + bg)[..., 0]     # [B, S]
    if seq_masks is not None:
        gates = gates + jnp.asarray(seq_masks, jnp.float32) * (-1000000000.0)
    p = jax.nn.softmax(gates, axis=-1)[..., None]               # [B, S, 1]
    return jnp.sum(seqs * p, axis=1)                            # [B, E]


if __name__ == "__main__":
    B, S, E = 16, 8, 128
    key = jax.random.PRNGKey(0)
    k_seq, k_w1, k_b1, k_wg, k_bg, k_m = jax.random.split(key, 6)

    seqs = jax.random.normal(k_seq, (B, S, E), dtype=jnp.float32)
    # PyTorch Linear parameter shapes: weight [out, in], bias [out].
    w1 = jax.random.normal(k_w1, (E, E), dtype=jnp.float32) * 0.1
    b1 = jax.random.normal(k_b1, (E,), dtype=jnp.float32) * 0.1
    wg = jax.random.normal(k_wg, (1, E), dtype=jnp.float32) * 0.1
    bg = jax.random.normal(k_bg, (1,), dtype=jnp.float32) * 0.1
    seq_masks = (jax.random.uniform(k_m, (B, S)) < 0.25).astype(jnp.float32)

    # exact f32 streaming path (strict correctness check)
    out_f32 = attention_layer(seqs, w1, b1, wg, bg, seq_masks, compute_dtype=jnp.float32)
    # perf-default path: bf16 operand streaming, f32 accumulation / softmax
    out_bf16 = attention_layer(seqs, w1, b1, wg, bg, seq_masks)
    out_nomask = attention_layer(seqs, w1, b1, wg, bg)
    # exercise the batch-padding path (B not a multiple of the batch tile)
    out_odd = attention_layer(seqs[:10], w1, b1, wg, bg, seq_masks[:10])
    jax.block_until_ready((out_f32, out_bf16, out_nomask, out_odd))

    ref_mask = _reference(seqs, w1, b1, wg, bg, seq_masks)
    ref_nomask = _reference(seqs, w1, b1, wg, bg)
    ref_odd = _reference(seqs[:10], w1, b1, wg, bg, seq_masks[:10])

    assert out_f32.shape == (B, E) and out_nomask.shape == (B, E) and out_odd.shape == (10, E)
    assert jnp.allclose(out_f32, ref_mask, atol=1e-2, rtol=1e-2)
    assert jnp.allclose(out_bf16, ref_mask, atol=5e-2, rtol=5e-2)      # bf16 operand streaming
    assert jnp.allclose(out_nomask, ref_nomask, atol=5e-2, rtol=5e-2)
    assert jnp.allclose(out_odd, ref_odd, atol=5e-2, rtol=5e-2)

    print("KERNEL_OK")
</pallas_src>

<mosaic_0001>
module attributes {stable_mosaic.version = 11 : i64} {
  func.func @_attn_kernel(%arg0: i32, %arg1: memref<16x8x128xf32, #tpu.memory_space<vmem>>, %arg2: memref<16x8x1xf32, #tpu.memory_space<vmem>>, %arg3: memref<128x128xf32, #tpu.memory_space<vmem>>, %arg4: memref<1x128xf32, #tpu.memory_space<vmem>>, %arg5: memref<1x128xf32, #tpu.memory_space<vmem>>, %arg6: memref<1xf32, #tpu.memory_space<smem>>, %arg7: memref<16x128xf32, #tpu.memory_space<vmem>>) attributes {dimension_semantics = [#tpu.dimension_semantics<parallel>], iteration_bounds = array<i64: 1>, scalar_prefetch = 0 : i64, scratch_operands = 0 : i64, tpu.core_type = #tpu.core_type<tc>, window_params = [{transform_indices = @transform_0, window_bounds = array<i64: 16, 8, 128>}, {transform_indices = @transform_1, window_bounds = array<i64: 16, 8, 1>}, {pipeline_mode = #tpu.pipeline_mode<synchronous>, transform_indices = @transform_2, window_bounds = array<i64: 128, 128>}, {pipeline_mode = #tpu.pipeline_mode<synchronous>, transform_indices = @transform_3, window_bounds = array<i64: 1, 128>}, {pipeline_mode = #tpu.pipeline_mode<synchronous>, transform_indices = @transform_4, window_bounds = array<i64: 1, 128>}, {transform_indices = @transform_5, window_bounds = array<i64: 1>}, {transform_indices = @transform_6, window_bounds = array<i64: 16, 128>}]} {
    %c0 = arith.constant 0 : index
    %c0_0 = arith.constant 0 : index
    %c0_1 = arith.constant 0 : index
    %0 = vector.load %arg1[%c0, %c0_0, %c0_1] : memref<16x8x128xf32, #tpu.memory_space<vmem>>, vector<16x8x128xf32>
    %1 = vector.shape_cast %0 : vector<16x8x128xf32> to vector<128x128xf32>
    %c0_2 = arith.constant 0 : index
    %c0_3 = arith.constant 0 : index
    %2 = vector.load %arg3[%c0_2, %c0_3] : memref<128x128xf32, #tpu.memory_space<vmem>>, vector<128x128xf32>
    %cst = arith.constant dense<0.000000e+00> : vector<128x128xf32>
    %3 = tpu.matmul %1, %2, %cst {dimension_numbers = #tpu.dot_dimension_numbers<[1], [0], [0], [1], [0, 0, 1, 1], [], []>} : vector<128x128xf32>, vector<128x128xf32>, vector<128x128xf32> -> vector<128x128xf32>
    %c0_4 = arith.constant 0 : index
    %c0_5 = arith.constant 0 : index
    %4 = vector.load %arg4[%c0_4, %c0_5] : memref<1x128xf32, #tpu.memory_space<vmem>>, vector<1x128xf32>
    %5 = vector.broadcast %4 : vector<1x128xf32> to vector<128x128xf32>
    %6 = arith.addf %3, %5 : vector<128x128xf32>
    %7 = math.tanh %6 : vector<128x128xf32>
    %8 = vector.shape_cast %7 : vector<128x128xf32> to vector<16x8x128xf32>
    %c0_6 = arith.constant 0 : index
    %c0_7 = arith.constant 0 : index
    %9 = vector.load %arg5[%c0_6, %c0_7] : memref<1x128xf32, #tpu.memory_space<vmem>>, vector<1x128xf32>
    %10 = vector.shape_cast %9 : vector<1x128xf32> to vector<1x1x128xf32>
    %11 = vector.broadcast %10 : vector<1x1x128xf32> to vector<16x8x128xf32>
    %12 = arith.mulf %8, %11 : vector<16x8x128xf32>
    %cst_8 = arith.constant dense<0.000000e+00> : vector<16x8xf32>
    %13 = vector.multi_reduction <add>, %12, %cst_8 [2] : vector<16x8x128xf32> to vector<16x8xf32>
    %14 = vector.shape_cast %13 : vector<16x8xf32> to vector<16x8x1xf32>
    %c0_9 = arith.constant 0 : index
    %15 = memref.load %arg6[%c0_9] : memref<1xf32, #tpu.memory_space<smem>>
    %16 = vector.broadcast %15 : f32 to vector<16x8x1xf32>
    %17 = arith.addf %14, %16 : vector<16x8x1xf32>
    %c0_10 = arith.constant 0 : index
    %c0_11 = arith.constant 0 : index
    %c0_12 = arith.constant 0 : index
    %18 = vector.load %arg2[%c0_10, %c0_11, %c0_12] : memref<16x8x1xf32, #tpu.memory_space<vmem>>, vector<16x8x1xf32>
    %cst_13 = arith.constant -1.000000e+09 : f32
    %19 = vector.broadcast %cst_13 : f32 to vector<16x8x1xf32>
    %20 = arith.mulf %18, %19 : vector<16x8x1xf32>
    %21 = arith.addf %17, %20 : vector<16x8x1xf32>
    %cst_14 = arith.constant dense<0xFF800000> : vector<16x1xf32>
    %22 = vector.multi_reduction <maximumf>, %21, %cst_14 [1] : vector<16x8x1xf32> to vector<16x1xf32>
    %23 = vector.shape_cast %22 : vector<16x1xf32> to vector<16x1x1xf32>
    %24 = vector.broadcast %23 : vector<16x1x1xf32> to vector<16x8x1xf32>
    %25 = arith.subf %21, %24 : vector<16x8x1xf32>
    %26 = math.exp %25 : vector<16x8x1xf32>
    %cst_15 = arith.constant dense<0.000000e+00> : vector<16x1xf32>
    %27 = vector.multi_reduction <add>, %26, %cst_15 [1] : vector<16x8x1xf32> to vector<16x1xf32>
    %28 = vector.shape_cast %27 : vector<16x1xf32> to vector<16x1x1xf32>
    %29 = vector.broadcast %28 : vector<16x1x1xf32> to vector<16x8x1xf32>
    %30 = arith.divf %26, %29 : vector<16x8x1xf32>
    %31 = vector.broadcast %30 : vector<16x8x1xf32> to vector<16x8x128xf32>
    %32 = arith.mulf %0, %31 : vector<16x8x128xf32>
    %cst_16 = arith.constant dense<0.000000e+00> : vector<16x128xf32>
    %33 = vector.multi_reduction <add>, %32, %cst_16 [1] : vector<16x8x128xf32> to vector<16x128xf32>
    %c0_17 = arith.constant 0 : index
    %c0_18 = arith.constant 0 : index
    %34 = vector.load %arg7[%c0_17, %c0_18] : memref<16x128xf32, #tpu.memory_space<vmem>>, vector<16x128xf32>
    tpu.vector_store %arg7[%c0_17, %c0_18], %33 {strides = array<i32>} : memref<16x128xf32, #tpu.memory_space<vmem>>, vector<16x128xf32>,
    return
  }
  func.func @transform_0(%arg0: i32) -> (i32, i32, i32) {
    %c0_i32 = arith.constant 0 : i32
    %c0_i32_0 = arith.constant 0 : i32
    %c0_i32_1 = arith.constant 0 : i32
    return %arg0, %c0_i32, %c0_i32_0 : i32, i32, i32
  }
  func.func @transform_1(%arg0: i32) -> (i32, i32, i32) {
    %c0_i32 = arith.constant 0 : i32
    %c0_i32_0 = arith.constant 0 : i32
    %c0_i32_1 = arith.constant 0 : i32
    return %arg0, %c0_i32, %c0_i32_0 : i32, i32, i32
  }
  func.func @transform_2(%arg0: i32) -> (i32, i32) {
    %c0_i32 = arith.constant 0 : i32
    %c0_i32_0 = arith.constant 0 : i32
    %c0_i32_1 = arith.constant 0 : i32
    return %c0_i32, %c0_i32_0 : i32, i32
  }
  func.func @transform_3(%arg0: i32) -> (i32, i32) {
    %c0_i32 = arith.constant 0 : i32
    %c0_i32_0 = arith.constant 0 : i32
    %c0_i32_1 = arith.constant 0 : i32
    return %c0_i32, %c0_i32_0 : i32, i32
  }
  func.func @transform_4(%arg0: i32) -> (i32, i32) {
    %c0_i32 = arith.constant 0 : i32
    %c0_i32_0 = arith.constant 0 : i32
    %c0_i32_1 = arith.constant 0 : i32
    return %c0_i32, %c0_i32_0 : i32, i32
  }
  func.func @transform_5(%arg0: i32) -> i32 {
    %c0_i32 = arith.constant 0 : i32
    %c0_i32_0 = arith.constant 0 : i32
    return %c0_i32 : i32
  }
  func.func @transform_6(%arg0: i32) -> (i32, i32) {
    %c0_i32 = arith.constant 0 : i32
    %c0_i32_0 = arith.constant 0 : i32
    return %arg0, %c0_i32 : i32, i32
  }
}

</mosaic_0001>

<llo_original>
// kernel: tpu_custom_call.1
$region0: #{tpu_custom_call.1}
  #allocation0 [shape = 'u32[]', space=smem, size = 0x4, offset = 0x4, fixed_abs, tag = 'smem constant byte address 0x4 - core index']
  #allocation1 [shape = 'u32[144,128]{1,0:T(1,128)}', space=vmem, size = 0x12000, scoped, tag = 'internal scratch']
  #allocation2 [shape = 'f32[1]{0:T(128)S(6)}', space=smem, size = 0x200, scoped, tag = 'scoped memory for tpu_custom_call.1']
  %s0 = inlined_call_operand.vmem [shape: f32[16,8,128], index: 0, kind: input, shape index: {}]
  %s1 = inlined_call_operand.vmem [shape: f32[16,8,1], index: 1, kind: input, shape index: {}]
  %s2 = inlined_call_operand.hbm [shape: f32[128,128], index: 2, kind: input, shape index: {}]
  %s3 = inlined_call_operand.vmem [shape: f32[1,128], index: 3, kind: input, shape index: {}]
  %s4 = inlined_call_operand.vmem [shape: f32[1,128], index: 4, kind: input, shape index: {}]
  %s5 = inlined_call_operand.<no memory space> [shape: f32[1], index: 5, kind: input, shape index: {}]
  %s6 = inlined_call_operand.hbm [shape: f32[16,128], index: 6, kind: output, shape index: {}]
  %s7 = sld [smem:[#allocation0]]
  $region38: #{tpu_custom_call.1} parent=0
    _
  %s9 = ssub.s32 1, %s7
  %s10 = scalar_select 0, %s9, %s7
  %11 = sst [smem:[#allocation2]] %s5
  $region1: #{tpu_custom_call.1} parent=0
    #allocation3 [shape = 'u8[65536]{0}', space=vmem, size = 0x10000, scoped, tag = 'input window, operand 2, single buffered']
    #allocation4 [shape = 's32[1]{0}', space=sflag, size = 0x4, scoped, tag = 'scoped memory for tpu_custom_call.1']
    #allocation5 [shape = 's32[1]{0}', space=sflag, size = 0x4, scoped, tag = 'scoped memory for tpu_custom_call.1']
    #allocation6 [shape = 'u8[8192]{0}', space=vmem, size = 0x2000, scoped, tag = 'output window, operand 0, single buffered']
    %12 = vsyncpa [#allocation4], 0
    %13 = vsyncpa [#allocation5], 0
    // Predicated region
    $region2: #{tpu_custom_call.1} parent=1 // pred_check
      _
    $region3: #{tpu_custom_call.1} parent=1 // pred_check_branch
      %15 = sbr.rel (0) target = $region5
    $region4: #{tpu_custom_call.1} parent=1 // pred_region
      _
    $region5: #{tpu_custom_call.1} parent=1 // pred_fallthru
      _
    // Predicated region
    $region6: #{tpu_custom_call.1} parent=1 // pred_check
      _
    $region7: #{tpu_custom_call.1} parent=1 // pred_check_branch
      %17 = sbr.rel (0) target = $region9
    $region8: #{tpu_custom_call.1} parent=1 // pred_region
      _
    $region9: #{tpu_custom_call.1} parent=1 // pred_fallthru
      _
    // Predicated region
    $region10: #{tpu_custom_call.1} parent=1 // pred_check
      _
    $region11: #{tpu_custom_call.1} parent=1 // pred_check_branch
      %19 = sbr.rel (0) target = $region13
    $region12: #{tpu_custom_call.1} parent=1 // pred_region
      %s21 = ssub.s32 2048, 2048
      %22 = vsyncadd [#allocation4], %s21
      %s23 = sshll.u32 [#allocation3], 4
      %s24 = int_to_ptr.vmem [resolvable:$true] %s23
      %29 = dma.hbm_to_vmem [thread:$0]  %s2, 2048, %s24, [#allocation4], 128, 128, 8
    $region13: #{tpu_custom_call.1} parent=1 // pred_fallthru
      _
    // Predicated region
    $region14: #{tpu_custom_call.1} parent=1 // pred_check
      _
    $region15: #{tpu_custom_call.1} parent=1 // pred_check_branch
      %31 = sbr.rel (0) target = $region17
    $region16: #{tpu_custom_call.1} parent=1 // pred_region
      _
    $region17: #{tpu_custom_call.1} parent=1 // pred_fallthru
      _
    // Predicated region
    $region18: #{tpu_custom_call.1} parent=1 // pred_check
      _
    $region19: #{tpu_custom_call.1} parent=1 // pred_check_branch
      %33 = sbr.rel (0) target = $region21
    $region20: #{tpu_custom_call.1} parent=1 // pred_region
      _
    $region21: #{tpu_custom_call.1} parent=1 // pred_fallthru
      _
    // Predicated region
    $region22: #{tpu_custom_call.1} parent=1 // pred_check
      _
    $region23: #{tpu_custom_call.1} parent=1 // pred_check_branch
      %35 = sbr.rel (0) target = $region25
    $region24: #{tpu_custom_call.1} parent=1 // pred_region
      _
    $region25: #{tpu_custom_call.1} parent=1 // pred_fallthru
      _
    // Predicated region
    $region26: #{tpu_custom_call.1} parent=1 // pred_check
      _
    $region27: #{tpu_custom_call.1} parent=1 // pred_check_branch
      %37 = sbr.rel (0) target = $region29
    $region28: #{tpu_custom_call.1} parent=1 // pred_region
      %38 = dma.done [#allocation4], 2048
    $region29: #{tpu_custom_call.1} parent=1 // pred_fallthru
      _
    %v39 = vld [vmem:[%s0] sm:$0xff]
    %v40 = vld [vmem:[%s0 + $0x8] sm:$0xff]
    %v41 = vld [vmem:[%s0 + $0x10] sm:$0xff]
    %v42 = vld [vmem:[%s0 + $0x18] sm:$0xff]
    %v43 = vld [vmem:[%s0 + $0x20] sm:$0xff]
    %v44 = vld [vmem:[%s0 + $0x28] sm:$0xff]
    %v45 = vld [vmem:[%s0 + $0x30] sm:$0xff]
    %v46 = vld [vmem:[%s0 + $0x38] sm:$0xff]
    %v47 = vld [vmem:[%s0 + $0x40] sm:$0xff]
    %v48 = vld [vmem:[%s0 + $0x48] sm:$0xff]
    %v49 = vld [vmem:[%s0 + $0x50] sm:$0xff]
    %v50 = vld [vmem:[%s0 + $0x58] sm:$0xff]
    %v51 = vld [vmem:[%s0 + $0x60] sm:$0xff]
    %v52 = vld [vmem:[%s0 + $0x68] sm:$0xff]
    %v53 = vld [vmem:[%s0 + $0x70] sm:$0xff]
    %v54 = vld [vmem:[%s0 + $0x78] sm:$0xff]
    %v55 = vld [vmem:[#allocation3] sm:$0xff]
    %v56 = vld [vmem:[#allocation3 + $0x8] sm:$0xff]
    %v57 = vld [vmem:[#allocation3 + $0x10] sm:$0xff]
    %v58 = vld [vmem:[#allocation3 + $0x18] sm:$0xff]
    %v59 = vld [vmem:[#allocation3 + $0x20] sm:$0xff]
    %v60 = vld [vmem:[#allocation3 + $0x28] sm:$0xff]
    %v61 = vld [vmem:[#allocation3 + $0x30] sm:$0xff]
    %v62 = vld [vmem:[#allocation3 + $0x38] sm:$0xff]
    %v63 = vld [vmem:[#allocation3 + $0x40] sm:$0xff]
    %v64 = vld [vmem:[#allocation3 + $0x48] sm:$0xff]
    %v65 = vld [vmem:[#allocation3 + $0x50] sm:$0xff]
    %v66 = vld [vmem:[#allocation3 + $0x58] sm:$0xff]
    %v67 = vld [vmem:[#allocation3 + $0x60] sm:$0xff]
    %v68 = vld [vmem:[#allocation3 + $0x68] sm:$0xff]
    %v69 = vld [vmem:[#allocation3 + $0x70] sm:$0xff]
    %v70 = vld [vmem:[#allocation3 + $0x78] sm:$0xff]
    %v71 = vld [vmem:[%s3] sm:$0x1]
    %v73 = vlaneseq
    %v74 = vshrl.u32 %v73, 7
    %v75 = vsub.s32 0, %v74
    %v76 = vrot.slane %v71, %v75
    %78 = vmatprep.subr.mxu0 0.0
    %79 = vmatpush1.msra.mxu0 %v55
    %80 = vmatprep.subr.mxu0 0.0
    %81 = vmatpush1.msra.mxu0 %v56
    %82 = vmatprep.subr.mxu0 0.0
    %83 = vmatpush1.msra.mxu0 %v57
    %84 = vmatprep.subr.mxu0 0.0
    %85 = vmatpush1.msra.mxu0 %v58
    %86 = vmatprep.subr.mxu0 0.0
    %87 = vmatpush1.msra.mxu0 %v59
    %88 = vmatprep.subr.mxu0 0.0
    %89 = vmatpush1.msra.mxu0 %v60
    %90 = vmatprep.subr.mxu0 0.0
    %91 = vmatpush1.msra.mxu0 %v61
    %92 = vmatprep.subr.mxu0 0.0
    %93 = vmatpush1.msra.mxu0 %v62
    %94 = vmatprep.subr.mxu0 0.0
    %95 = vmatpush1.msra.mxu0 %v63
    %96 = vmatprep.subr.mxu0 0.0
    %97 = vmatpush1.msra.mxu0 %v64
    %98 = vmatprep.subr.mxu0 0.0
    %99 = vmatpush1.msra.mxu0 %v65
    %100 = vmatprep.subr.mxu0 0.0
    %101 = vmatpush1.msra.mxu0 %v66
    %102 = vmatprep.subr.mxu0 0.0
    %103 = vmatpush1.msra.mxu0 %v67
    %104 = vmatprep.subr.mxu0 0.0
    %105 = vmatpush1.msra.mxu0 %v68
    %106 = vmatprep.subr.mxu0 0.0
    %107 = vmatpush1.msra.mxu0 %v69
    %108 = vmatprep.subr.mxu0 0.0
    %109 = vmatpush1.msra.mxu0 %v70
    %110 = vmatprep.subr.mxu0 0.0
    %111 = vmatpush1.msra.mxu0 0.0
    %112 = vmatprep.subr.mxu0 0.0
    %113 = vmatpush1.msra.mxu0 0.0
    %114 = vmatprep.subr.mxu0 0.0
    %115 = vmatpush1.msra.mxu0 0.0
    %116 = vmatprep.subr.mxu0 0.0
    %117 = vmatpush1.msra.mxu0 0.0
    %118 = vmatprep.subr.mxu0 0.0
    %119 = vmatpush1.msra.mxu0 0.0
    %120 = vmatprep.subr.mxu0 0.0
    %121 = vmatpush1.msra.mxu0 0.0
    %122 = vmatprep.subr.mxu0 0.0
    %123 = vmatpush1.msra.mxu0 0.0
    %124 = vmatprep.subr.mxu0 0.0
    %125 = vmatpush1.msra.mxu0 0.0
    %126 = vmatprep.subr.mxu0 0.0
    %127 = vmatpush1.msra.mxu0 0.0
    %128 = vmatprep.subr.mxu0 0.0
    %129 = vmatpush1.msra.mxu0 0.0
    %130 = vmatprep.subr.mxu0 0.0
    %131 = vmatpush1.msra.mxu0 0.0
    %132 = vmatprep.subr.mxu0 0.0
    %133 = vmatpush1.msra.mxu0 0.0
    %134 = vmatprep.subr.mxu0 0.0
    %135 = vmatpush1.msra.mxu0 0.0
    %136 = vmatprep.subr.mxu0 0.0
    %137 = vmatpush1.msra.mxu0 0.0
    %138 = vmatprep.subr.mxu0 0.0
    %139 = vmatpush1.msra.mxu0 0.0
    %140 = vmatprep.subr.mxu0 0.0
    %141 = vmatpush1.msra.mxu0 0.0
    %142 = vmatprep.mubr.f32.mxu0 0.0
    %143 = vmatmul.mubr.f32.gmra.mrb[0].mxu0 %v39
    %v144 = vpop.f32.mrb[0].mxu0
    %v145 = vadd.f32 %v76, %v144
    %v146 = vpop.f32.mrb[0].mxu0
    %147 = vmatprep.mubr.f32.mxu0 0.0
    %148 = vmatmul.mubr.f32.gmra.mrb[0].mxu0 %v40
    %v149 = vpop.f32.mrb[0].mxu0
    %v150 = vadd.f32 %v76, %v149
    %v151 = vpop.f32.mrb[0].mxu0
    %152 = vmatprep.mubr.f32.mxu0 0.0
    %153 = vmatmul.mubr.f32.gmra.mrb[0].mxu0 %v41
    %v154 = vpop.f32.mrb[0].mxu0
    %v155 = vadd.f32 %v76, %v154
    %v156 = vpop.f32.mrb[0].mxu0
    %157 = vmatprep.mubr.f32.mxu0 0.0
    %158 = vmatmul.mubr.f32.gmra.mrb[0].mxu0 %v42
    %v159 = vpop.f32.mrb[0].mxu0
    %v160 = vadd.f32 %v76, %v159
    %v161 = vpop.f32.mrb[0].mxu0
    %162 = vmatprep.mubr.f32.mxu0 0.0
    %163 = vmatmul.mubr.f32.gmra.mrb[0].mxu0 %v43
    %v164 = vpop.f32.mrb[0].mxu0
    %v165 = vadd.f32 %v76, %v164
    %v166 = vpop.f32.mrb[0].mxu0
    %167 = vmatprep.mubr.f32.mxu0 0.0
    %168 = vmatmul.mubr.f32.gmra.mrb[0].mxu0 %v44
    %v169 = vpop.f32.mrb[0].mxu0
    %v170 = vadd.f32 %v76, %v169
    %v171 = vpop.f32.mrb[0].mxu0
    %172 = vmatprep.mubr.f32.mxu0 0.0
    %173 = vmatmul.mubr.f32.gmra.mrb[0].mxu0 %v45
    %v174 = vpop.f32.mrb[0].mxu0
    %v175 = vadd.f32 %v76, %v174
    %v176 = vpop.f32.mrb[0].mxu0
    %177 = vmatprep.mubr.f32.mxu0 0.0
    %178 = vmatmul.mubr.f32.gmra.mrb[0].mxu0 %v46
    %v179 = vpop.f32.mrb[0].mxu0
    %v180 = vadd.f32 %v76, %v179
    %v181 = vpop.f32.mrb[0].mxu0
    %182 = vmatprep.mubr.f32.mxu0 0.0
    %183 = vmatmul.mubr.f32.gmra.mrb[0].mxu0 %v47
    %v184 = vpop.f32.mrb[0].mxu0
    %v185 = vadd.f32 %v76, %v184
    %v186 = vpop.f32.mrb[0].mxu0
    %187 = vmatprep.mubr.f32.mxu0 0.0
    %188 = vmatmul.mubr.f32.gmra.mrb[0].mxu0 %v48
    %v189 = vpop.f32.mrb[0].mxu0
    %v190 = vadd.f32 %v76, %v189
    %v191 = vpop.f32.mrb[0].mxu0
    %192 = vmatprep.mubr.f32.mxu0 0.0
    %193 = vmatmul.mubr.f32.gmra.mrb[0].mxu0 %v49
    %v194 = vpop.f32.mrb[0].mxu0
    %v195 = vadd.f32 %v76, %v194
    %v196 = vpop.f32.mrb[0].mxu0
    %197 = vmatprep.mubr.f32.mxu0 0.0
    %198 = vmatmul.mubr.f32.gmra.mrb[0].mxu0 %v50
    %v199 = vpop.f32.mrb[0].mxu0
    %v200 = vadd.f32 %v76, %v199
    %v201 = vpop.f32.mrb[0].mxu0
    %202 = vmatprep.mubr.f32.mxu0 0.0
    %203 = vmatmul.mubr.f32.gmra.mrb[0].mxu0 %v51
    %v204 = vpop.f32.mrb[0].mxu0
    %v205 = vadd.f32 %v76, %v204
    %v206 = vpop.f32.mrb[0].mxu0
    %207 = vmatprep.mubr.f32.mxu0 0.0
    %208 = vmatmul.mubr.f32.gmra.mrb[0].mxu0 %v52
    %v209 = vpop.f32.mrb[0].mxu0
    %v210 = vadd.f32 %v76, %v209
    %v211 = vpop.f32.mrb[0].mxu0
    %212 = vmatprep.mubr.f32.mxu0 0.0
    %213 = vmatmul.mubr.f32.gmra.mrb[0].mxu0 %v53
    %v214 = vpop.f32.mrb[0].mxu0
    %v215 = vadd.f32 %v76, %v214
    %v216 = vpop.f32.mrb[0].mxu0
    %217 = vmatprep.mubr.f32.mxu0 0.0
    %218 = vmatmul.mubr.f32.gmra.mrb[0].mxu0 %v54
    %v219 = vpop.f32.mrb[0].mxu0
    %v220 = vadd.f32 %v76, %v219
    %v221 = vpop.f32.mrb[0].mxu0
    %222 = vdwg.mxu0
    %v223 = vtanh.pop %v145
    %v224 = vtanh.pop %v150
    %v225 = vtanh.pop %v155
    %v226 = vtanh.pop %v160
    %v227 = vtanh.pop %v165
    %v228 = vtanh.pop %v170
    %v229 = vtanh.pop %v175
    %v230 = vtanh.pop %v180
    %v231 = vtanh.pop %v185
    %v232 = vtanh.pop %v190
    %v233 = vtanh.pop %v195
    %v234 = vtanh.pop %v200
    %v235 = vtanh.pop %v205
    %v236 = vtanh.pop %v210
    %v237 = vtanh.pop %v215
    %v238 = vtanh.pop %v220
    %v239 = vld [vmem:[%s4] sm:$0x1]
    %v241 = vlaneseq
    %v242 = vshrl.u32 %v241, 7
    %v243 = vsub.s32 0, %v242
    %v244 = vrot.slane %v239, %v243
    %v246 = vmul.f32 %v223, %v244
    %v247 = vmul.f32 %v224, %v244
    %v248 = vmul.f32 %v225, %v244
    %v249 = vmul.f32 %v226, %v244
    %v250 = vmul.f32 %v227, %v244
    %v251 = vmul.f32 %v228, %v244
    %v252 = vmul.f32 %v229, %v244
    %v253 = vmul.f32 %v230, %v244
    %v254 = vmul.f32 %v231, %v244
    %v255 = vmul.f32 %v232, %v244
    %v256 = vmul.f32 %v233, %v244
    %v257 = vmul.f32 %v234, %v244
    %v258 = vmul.f32 %v235, %v244
    %v259 = vmul.f32 %v236, %v244
    %v260 = vmul.f32 %v237, %v244
    %v261 = vmul.f32 %v238, %v244
    %262 = vadd.xlane.f32.xlu0 %v246
    %v263 = vpop.xlane.xlu0 %262
    %264 = vadd.xlane.f32.xlu0 %v247
    %v265 = vpop.xlane.xlu0 %264
    %266 = vadd.xlane.f32.xlu0 %v248
    %v267 = vpop.xlane.xlu0 %266
    %268 = vadd.xlane.f32.xlu0 %v249
    %v269 = vpop.xlane.xlu0 %268
    %270 = vadd.xlane.f32.xlu0 %v250
    %v271 = vpop.xlane.xlu0 %270
    %272 = vadd.xlane.f32.xlu0 %v251
    %v273 = vpop.xlane.xlu0 %272
    %274 = vadd.xlane.f32.xlu0 %v252
    %v275 = vpop.xlane.xlu0 %274
    %276 = vadd.xlane.f32.xlu0 %v253
    %v277 = vpop.xlane.xlu0 %276
    %278 = vadd.xlane.f32.xlu0 %v254
    %v279 = vpop.xlane.xlu0 %278
    %280 = vadd.xlane.f32.xlu0 %v255
    %v281 = vpop.xlane.xlu0 %280
    %282 = vadd.xlane.f32.xlu0 %v256
    %v283 = vpop.xlane.xlu0 %282
    %284 = vadd.xlane.f32.xlu0 %v257
    %v285 = vpop.xlane.xlu0 %284
    %286 = vadd.xlane.f32.xlu0 %v258
    %v287 = vpop.xlane.xlu0 %286
    %288 = vadd.xlane.f32.xlu0 %v259
    %v289 = vpop.xlane.xlu0 %288
    %290 = vadd.xlane.f32.xlu0 %v260
    %v291 = vpop.xlane.xlu0 %290
    %292 = vadd.xlane.f32.xlu0 %v261
    %v293 = vpop.xlane.xlu0 %292
    %s294 = sld [smem:[#allocation2]]
    %v295 = vstv %s294
    %v296 = vadd.f32 %v263, %v295
    %v297 = vadd.f32 %v265, %v295
    %v298 = vadd.f32 %v267, %v295
    %v299 = vadd.f32 %v269, %v295
    %v300 = vadd.f32 %v271, %v295
    %v301 = vadd.f32 %v273, %v295
    %v302 = vadd.f32 %v275, %v295
    %v303 = vadd.f32 %v277, %v295
    %v304 = vadd.f32 %v279, %v295
    %v305 = vadd.f32 %v281, %v295
    %v306 = vadd.f32 %v283, %v295
    %v307 = vadd.f32 %v285, %v295
    %v308 = vadd.f32 %v287, %v295
    %v309 = vadd.f32 %v289, %v295
    %v310 = vadd.f32 %v291, %v295
    %v311 = vadd.f32 %v293, %v295
    %v312 = vld [vmem:[%s1] sm:$0xff]
    %v313 = vld [vmem:[%s1 + $0x8] sm:$0xff]
    %v314 = vld [vmem:[%s1 + $0x10] sm:$0xff]
    %v315 = vld [vmem:[%s1 + $0x18] sm:$0xff]
    %v316 = vld [vmem:[%s1 + $0x20] sm:$0xff]
    %v317 = vld [vmem:[%s1 + $0x28] sm:$0xff]
    %v318 = vld [vmem:[%s1 + $0x30] sm:$0xff]
    %v319 = vld [vmem:[%s1 + $0x38] sm:$0xff]
    %v320 = vld [vmem:[%s1 + $0x40] sm:$0xff]
    %v321 = vld [vmem:[%s1 + $0x48] sm:$0xff]
    %v322 = vld [vmem:[%s1 + $0x50] sm:$0xff]
    %v323 = vld [vmem:[%s1 + $0x58] sm:$0xff]
    %v324 = vld [vmem:[%s1 + $0x60] sm:$0xff]
    %v325 = vld [vmem:[%s1 + $0x68] sm:$0xff]
    %v326 = vld [vmem:[%s1 + $0x70] sm:$0xff]
    %v327 = vld [vmem:[%s1 + $0x78] sm:$0xff]
    %v328 = vmul.f32 %v312, -1e+09
    %v329 = vmul.f32 %v313, -1e+09
    %v330 = vmul.f32 %v314, -1e+09
    %v331 = vmul.f32 %v315, -1e+09
    %v332 = vmul.f32 %v316, -1e+09
    %v333 = vmul.f32 %v317, -1e+09
    %v334 = vmul.f32 %v318, -1e+09
    %v335 = vmul.f32 %v319, -1e+09
    %v336 = vmul.f32 %v320, -1e+09
    %v337 = vmul.f32 %v321, -1e+09
    %v338 = vmul.f32 %v322, -1e+09
    %v339 = vmul.f32 %v323, -1e+09
    %v340 = vmul.f32 %v324, -1e+09
    %v341 = vmul.f32 %v325, -1e+09
    %v342 = vmul.f32 %v326, -1e+09
    %v343 = vmul.f32 %v327, -1e+09
    %v344 = vadd.f32 %v296, %v328
    %v345 = vadd.f32 %v297, %v329
    %v346 = vadd.f32 %v298, %v330
    %v347 = vadd.f32 %v299, %v331
    %v348 = vadd.f32 %v300, %v332
    %v349 = vadd.f32 %v301, %v333
    %v350 = vadd.f32 %v302, %v334
    %v351 = vadd.f32 %v303, %v335
    %v352 = vadd.f32 %v304, %v336
    %v353 = vadd.f32 %v305, %v337
    %v354 = vadd.f32 %v306, %v338
    %v355 = vadd.f32 %v307, %v339
    %v356 = vadd.f32 %v308, %v340
    %v357 = vadd.f32 %v309, %v341
    %v358 = vadd.f32 %v310, %v342
    %v359 = vadd.f32 %v311, %v343
    %vm360 = vcmask 7168
    %v361 = vsel %vm360, %v344, -inf
    %v362 = vrot.slane %v361, 4
    %v363 = vmax.f32 %v361, %v362
    %v364 = vrot.slane %v363, 2
    %v365 = vmax.f32 %v363, %v364
    %v366 = vrot.slane %v365, 1
    %v367 = vmax.f32 %v365, %v366
    %v368 = vsel %vm360, %v345, -inf
    %v369 = vrot.slane %v368, 4
    %v370 = vmax.f32 %v368, %v369
    %v371 = vrot.slane %v370, 2
    %v372 = vmax.f32 %v370, %v371
    %v373 = vrot.slane %v372, 1
    %v374 = vmax.f32 %v372, %v373
    %v375 = vsel %vm360, %v346, -inf
    %v376 = vrot.slane %v375, 4
    %v377 = vmax.f32 %v375, %v376
    %v378 = vrot.slane %v377, 2
    %v379 = vmax.f32 %v377, %v378
    %v380 = vrot.slane %v379, 1
    %v381 = vmax.f32 %v379, %v380
    %v382 = vsel %vm360, %v347, -inf
    %v383 = vrot.slane %v382, 4
    %v384 = vmax.f32 %v382, %v383
    %v385 = vrot.slane %v384, 2
    %v386 = vmax.f32 %v384, %v385
    %v387 = vrot.slane %v386, 1
    %v388 = vmax.f32 %v386, %v387
    %v389 = vsel %vm360, %v348, -inf
    %v390 = vrot.slane %v389, 4
    %v391 = vmax.f32 %v389, %v390
    %v392 = vrot.slane %v391, 2
    %v393 = vmax.f32 %v391, %v392
    %v394 = vrot.slane %v393, 1
    %v395 = vmax.f32 %v393, %v394
    %v396 = vsel %vm360, %v349, -inf
    %v397 = vrot.slane %v396, 4
    %v398 = vmax.f32 %v396, %v397
    %v399 = vrot.slane %v398, 2
    %v400 = vmax.f32 %v398, %v399
    %v401 = vrot.slane %v400, 1
    %v402 = vmax.f32 %v400, %v401
    %v403 = vsel %vm360, %v350, -inf
    %v404 = vrot.slane %v403, 4
    %v405 = vmax.f32 %v403, %v404
    %v406 = vrot.slane %v405, 2
    %v407 = vmax.f32 %v405, %v406
    %v408 = vrot.slane %v407, 1
    %v409 = vmax.f32 %v407, %v408
    %v410 = vsel %vm360, %v351, -inf
    %v411 = vrot.slane %v410, 4
    %v412 = vmax.f32 %v410, %v411
    %v413 = vrot.slane %v412, 2
    %v414 = vmax.f32 %v412, %v413
    %v415 = vrot.slane %v414, 1
    %v416 = vmax.f32 %v414, %v415
    %v417 = vsel %vm360, %v352, -inf
    %v418 = vrot.slane %v417, 4
    %v419 = vmax.f32 %v417, %v418
    %v420 = vrot.slane %v419, 2
    %v421 = vmax.f32 %v419, %v420
    %v422 = vrot.slane %v421, 1
    %v423 = vmax.f32 %v421, %v422
    %v424 = vsel %vm360, %v353, -inf
    %v425 = vrot.slane %v424, 4
    %v426 = vmax.f32 %v424, %v425
    %v427 = vrot.slane %v426, 2
    %v428 = vmax.f32 %v426, %v427
    %v429 = vrot.slane %v428, 1
    %v430 = vmax.f32 %v428, %v429
    %v431 = vsel %vm360, %v354, -inf
    %v432 = vrot.slane %v431, 4
    %v433 = vmax.f32 %v431, %v432
    %v434 = vrot.slane %v433, 2
    %v435 = vmax.f32 %v433, %v434
    %v436 = vrot.slane %v435, 1
    %v437 = vmax.f32 %v435, %v436
    %v438 = vsel %vm360, %v355, -inf
    %v439 = vrot.slane %v438, 4
    %v440 = vmax.f32 %v438, %v439
    %v441 = vrot.slane %v440, 2
    %v442 = vmax.f32 %v440, %v441
    %v443 = vrot.slane %v442, 1
    %v444 = vmax.f32 %v442, %v443
    %v445 = vsel %vm360, %v356, -inf
    %v446 = vrot.slane %v445, 4
    %v447 = vmax.f32 %v445, %v446
    %v448 = vrot.slane %v447, 2
    %v449 = vmax.f32 %v447, %v448
    %v450 = vrot.slane %v449, 1
    %v451 = vmax.f32 %v449, %v450
    %v452 = vsel %vm360, %v357, -inf
    %v453 = vrot.slane %v452, 4
    %v454 = vmax.f32 %v452, %v453
    %v455 = vrot.slane %v454, 2
    %v456 = vmax.f32 %v454, %v455
    %v457 = vrot.slane %v456, 1
    %v458 = vmax.f32 %v456, %v457
    %v459 = vsel %vm360, %v358, -inf
    %v460 = vrot.slane %v459, 4
    %v461 = vmax.f32 %v459, %v460
    %v462 = vrot.slane %v461, 2
    %v463 = vmax.f32 %v461, %v462
    %v464 = vrot.slane %v463, 1
    %v465 = vmax.f32 %v463, %v464
    %v466 = vsel %vm360, %v359, -inf
    %v467 = vrot.slane %v466, 4
    %v468 = vmax.f32 %v466, %v467
    %v469 = vrot.slane %v468, 2
    %v470 = vmax.f32 %v468, %v469
    %v471 = vrot.slane %v470, 1
    %v472 = vmax.f32 %v470, %v471
    %v473 = vsub.f32 %v344, %v367
    %v474 = vsub.f32 %v345, %v374
    %v475 = vsub.f32 %v346, %v381
    %v476 = vsub.f32 %v347, %v388
    %v477 = vsub.f32 %v348, %v395
    %v478 = vsub.f32 %v349, %v402
    %v479 = vsub.f32 %v350, %v409
    %v480 = vsub.f32 %v351, %v416
    %v481 = vsub.f32 %v352, %v423
    %v482 = vsub.f32 %v353, %v430
    %v483 = vsub.f32 %v354, %v437
    %v484 = vsub.f32 %v355, %v444
    %v485 = vsub.f32 %v356, %v451
    %v486 = vsub.f32 %v357, %v458
    %v487 = vsub.f32 %v358, %v465
    %v488 = vsub.f32 %v359, %v472
    %v489 = vmul.f32 %v473, 1.442695
    %v490 = vpow.pop %v489
    %v491 = vmul.f32 %v474, 1.442695
    %v492 = vpow.pop %v491
    %v493 = vmul.f32 %v475, 1.442695
    %v494 = vpow.pop %v493
    %v495 = vmul.f32 %v476, 1.442695
    %v496 = vpow.pop %v495
    %v497 = vmul.f32 %v477, 1.442695
    %v498 = vpow.pop %v497
    %v499 = vmul.f32 %v478, 1.442695
    %v500 = vpow.pop %v499
    %v501 = vmul.f32 %v479, 1.442695
    %v502 = vpow.pop %v501
    %v503 = vmul.f32 %v480, 1.442695
    %v504 = vpow.pop %v503
    %v505 = vmul.f32 %v481, 1.442695
    %v506 = vpow.pop %v505
    %v507 = vmul.f32 %v482, 1.442695
    %v508 = vpow.pop %v507
    %v509 = vmul.f32 %v483, 1.442695
    %v510 = vpow.pop %v509
    %v511 = vmul.f32 %v484, 1.442695
    %v512 = vpow.pop %v511
    %v513 = vmul.f32 %v485, 1.442695
    %v514 = vpow.pop %v513
    %v515 = vmul.f32 %v486, 1.442695
    %v516 = vpow.pop %v515
    %v517 = vmul.f32 %v487, 1.442695
    %v518 = vpow.pop %v517
    %v519 = vmul.f32 %v488, 1.442695
    %v520 = vpow.pop %v519
    %v521 = vsel %vm360, %v490, 0.0
    %v522 = vrot.slane %v521, 4
    %v523 = vadd.f32 %v521, %v522
    %v524 = vrot.slane %v523, 2
    %v525 = vadd.f32 %v523, %v524
    %v526 = vrot.slane %v525, 1
    %v527 = vadd.f32 %v525, %v526
    %v528 = vsel %vm360, %v492, 0.0
    %v529 = vrot.slane %v528, 4
    %v530 = vadd.f32 %v528, %v529
    %v531 = vrot.slane %v530, 2
    %v532 = vadd.f32 %v530, %v531
    %v533 = vrot.slane %v532, 1
    %v534 = vadd.f32 %v532, %v533
    %v535 = vsel %vm360, %v494, 0.0
    %v536 = vrot.slane %v535, 4
    %v537 = vadd.f32 %v535, %v536
    %v538 = vrot.slane %v537, 2
    %v539 = vadd.f32 %v537, %v538
    %v540 = vrot.slane %v539, 1
    %v541 = vadd.f32 %v539, %v540
    %v542 = vsel %vm360, %v496, 0.0
    %v543 = vrot.slane %v542, 4
    %v544 = vadd.f32 %v542, %v543
    %v545 = vrot.slane %v544, 2
    %v546 = vadd.f32 %v544, %v545
    %v547 = vrot.slane %v546, 1
    %v548 = vadd.f32 %v546, %v547
    %v549 = vsel %vm360, %v498, 0.0
    %v550 = vrot.slane %v549, 4
    %v551 = vadd.f32 %v549, %v550
    %v552 = vrot.slane %v551, 2
    %v553 = vadd.f32 %v551, %v552
    %v554 = vrot.slane %v553, 1
    %v555 = vadd.f32 %v553, %v554
    %v556 = vsel %vm360, %v500, 0.0
    %v557 = vrot.slane %v556, 4
    %v558 = vadd.f32 %v556, %v557
    %v559 = vrot.slane %v558, 2
    %v560 = vadd.f32 %v558, %v559
    %v561 = vrot.slane %v560, 1
    %v562 = vadd.f32 %v560, %v561
    %v563 = vsel %vm360, %v502, 0.0
    %v564 = vrot.slane %v563, 4
    %v565 = vadd.f32 %v563, %v564
    %v566 = vrot.slane %v565, 2
    %v567 = vadd.f32 %v565, %v566
    %v568 = vrot.slane %v567, 1
    %v569 = vadd.f32 %v567, %v568
    %v570 = vsel %vm360, %v504, 0.0
    %v571 = vrot.slane %v570, 4
    %v572 = vadd.f32 %v570, %v571
    %v573 = vrot.slane %v572, 2
    %v574 = vadd.f32 %v572, %v573
    %v575 = vrot.slane %v574, 1
    %v576 = vadd.f32 %v574, %v575
    %v577 = vsel %vm360, %v506, 0.0
    %v578 = vrot.slane %v577, 4
    %v579 = vadd.f32 %v577, %v578
    %v580 = vrot.slane %v579, 2
    %v581 = vadd.f32 %v579, %v580
    %v582 = vrot.slane %v581, 1
    %v583 = vadd.f32 %v581, %v582
    %v584 = vsel %vm360, %v508, 0.0
    %v585 = vrot.slane %v584, 4
    %v586 = vadd.f32 %v584, %v585
    %v587 = vrot.slane %v586, 2
    %v588 = vadd.f32 %v586, %v587
    %v589 = vrot.slane %v588, 1
    %v590 = vadd.f32 %v588, %v589
    %v591 = vsel %vm360, %v510, 0.0
    %v592 = vrot.slane %v591, 4
    %v593 = vadd.f32 %v591, %v592
    %v594 = vrot.slane %v593, 2
    %v595 = vadd.f32 %v593, %v594
    %v596 = vrot.slane %v595, 1
    %v597 = vadd.f32 %v595, %v596
    %v598 = vsel %vm360, %v512, 0.0
    %v599 = vrot.slane %v598, 4
    %v600 = vadd.f32 %v598, %v599
    %v601 = vrot.slane %v600, 2
    %v602 = vadd.f32 %v600, %v601
    %v603 = vrot.slane %v602, 1
    %v604 = vadd.f32 %v602, %v603
    %v605 = vsel %vm360, %v514, 0.0
    %v606 = vrot.slane %v605, 4
    %v607 = vadd.f32 %v605, %v606
    %v608 = vrot.slane %v607, 2
    %v609 = vadd.f32 %v607, %v608
    %v610 = vrot.slane %v609, 1
    %v611 = vadd.f32 %v609, %v610
    %v612 = vsel %vm360, %v516, 0.0
    %v613 = vrot.slane %v612, 4
    %v614 = vadd.f32 %v612, %v613
    %v615 = vrot.slane %v614, 2
    %v616 = vadd.f32 %v614, %v615
    %v617 = vrot.slane %v616, 1
    %v618 = vadd.f32 %v616, %v617
    %v619 = vsel %vm360, %v518, 0.0
    %v620 = vrot.slane %v619, 4
    %v621 = vadd.f32 %v619, %v620
    %v622 = vrot.slane %v621, 2
    %v623 = vadd.f32 %v621, %v622
    %v624 = vrot.slane %v623, 1
    %v625 = vadd.f32 %v623, %v624
    %v626 = vsel %vm360, %v520, 0.0
    %v627 = vrot.slane %v626, 4
    %v628 = vadd.f32 %v626, %v627
    %v629 = vrot.slane %v628, 2
    %v630 = vadd.f32 %v628, %v629
    %v631 = vrot.slane %v630, 1
    %v632 = vadd.f32 %v630, %v631
    %v633 = vrcp.pop %v527
    %v634 = vmul.f32 %v490, %v633
    %v635 = vrcp.pop %v534
    %v636 = vmul.f32 %v492, %v635
    %v637 = vrcp.pop %v541
    %v638 = vmul.f32 %v494, %v637
    %v639 = vrcp.pop %v548
    %v640 = vmul.f32 %v496, %v639
    %v641 = vrcp.pop %v555
    %v642 = vmul.f32 %v498, %v641
    %v643 = vrcp.pop %v562
    %v644 = vmul.f32 %v500, %v643
    %v645 = vrcp.pop %v569
    %v646 = vmul.f32 %v502, %v645
    %v647 = vrcp.pop %v576
    %v648 = vmul.f32 %v504, %v647
    %v649 = vrcp.pop %v583
    %v650 = vmul.f32 %v506, %v649
    %v651 = vrcp.pop %v590
    %v652 = vmul.f32 %v508, %v651
    %v653 = vrcp.pop %v597
    %v654 = vmul.f32 %v510, %v653
    %v655 = vrcp.pop %v604
    %v656 = vmul.f32 %v512, %v655
    %v657 = vrcp.pop %v611
    %v658 = vmul.f32 %v514, %v657
    %v659 = vrcp.pop %v618
    %v660 = vmul.f32 %v516, %v659
    %v661 = vrcp.pop %v625
    %v662 = vmul.f32 %v518, %v661
    %v663 = vrcp.pop %v632
    %v664 = vmul.f32 %v520, %v663
    %666 = vset.pattern.permute.xlu0 0
    %667 = vperm.xlu0 %666, %v634
    %v668 = vpop.permute.xlu0 %667
    %671 = vset.pattern.permute.xlu0 0
    %672 = vperm.xlu0 %671, %v636
    %v673 = vpop.permute.xlu0 %672
    %676 = vset.pattern.permute.xlu0 0
    %677 = vperm.xlu0 %676, %v638
    %v678 = vpop.permute.xlu0 %677
    %681 = vset.pattern.permute.xlu0 0
    %682 = vperm.xlu0 %681, %v640
    %v683 = vpop.permute.xlu0 %682
    %686 = vset.pattern.permute.xlu0 0
    %687 = vperm.xlu0 %686, %v642
    %v688 = vpop.permute.xlu0 %687
    %691 = vset.pattern.permute.xlu0 0
    %692 = vperm.xlu0 %691, %v644
    %v693 = vpop.permute.xlu0 %692
    %696 = vset.pattern.permute.xlu0 0
    %697 = vperm.xlu0 %696, %v646
    %v698 = vpop.permute.xlu0 %697
    %701 = vset.pattern.permute.xlu0 0
    %702 = vperm.xlu0 %701, %v648
    %v703 = vpop.permute.xlu0 %702
    %706 = vset.pattern.permute.xlu0 0
    %707 = vperm.xlu0 %706, %v650
    %v708 = vpop.permute.xlu0 %707
    %711 = vset.pattern.permute.xlu0 0
    %712 = vperm.xlu0 %711, %v652
    %v713 = vpop.permute.xlu0 %712
    %716 = vset.pattern.permute.xlu0 0
    %717 = vperm.xlu0 %716, %v654
    %v718 = vpop.permute.xlu0 %717
    %721 = vset.pattern.permute.xlu0 0
    %722 = vperm.xlu0 %721, %v656
    %v723 = vpop.permute.xlu0 %722
    %726 = vset.pattern.permute.xlu0 0
    %727 = vperm.xlu0 %726, %v658
    %v728 = vpop.permute.xlu0 %727
    %731 = vset.pattern.permute.xlu0 0
    %732 = vperm.xlu0 %731, %v660
    %v733 = vpop.permute.xlu0 %732
    %736 = vset.pattern.permute.xlu0 0
    %737 = vperm.xlu0 %736, %v662
    %v738 = vpop.permute.xlu0 %737
    %741 = vset.pattern.permute.xlu0 0
    %742 = vperm.xlu0 %741, %v664
    %v743 = vpop.permute.xlu0 %742
    %v745 = vmul.f32 %v39, %v668
    %v746 = vmul.f32 %v40, %v673
    %v747 = vmul.f32 %v41, %v678
    %v748 = vmul.f32 %v42, %v683
    %v749 = vmul.f32 %v43, %v688
    %v750 = vmul.f32 %v44, %v693
    %v751 = vmul.f32 %v45, %v698
    %v752 = vmul.f32 %v46, %v703
    %v753 = vmul.f32 %v47, %v708
    %v754 = vmul.f32 %v48, %v713
    %v755 = vmul.f32 %v49, %v718
    %v756 = vmul.f32 %v50, %v723
    %v757 = vmul.f32 %v51, %v728
    %v758 = vmul.f32 %v52, %v733
    %v759 = vmul.f32 %v53, %v738
    %v760 = vmul.f32 %v54, %v743
    %v761 = vrot.slane %v745, 4
    %v762 = vadd.f32 %v745, %v761
    %v763 = vrot.slane %v762, 2
    %v764 = vadd.f32 %v762, %v763
    %v765 = vrot.slane %v764, 1
    %v766 = vadd.f32 %v764, %v765
    %v767 = vrot.slane %v746, 4
    %v768 = vadd.f32 %v746, %v767
    %v769 = vrot.slane %v768, 2
    %v770 = vadd.f32 %v768, %v769
    %v771 = vrot.slane %v770, 1
    %v772 = vadd.f32 %v770, %v771
    %v773 = vrot.slane %v747, 4
    %v774 = vadd.f32 %v747, %v773
    %v775 = vrot.slane %v774, 2
    %v776 = vadd.f32 %v774, %v775
    %v777 = vrot.slane %v776, 1
    %v778 = vadd.f32 %v776, %v777
    %v779 = vrot.slane %v748, 4
    %v780 = vadd.f32 %v748, %v779
    %v781 = vrot.slane %v780, 2
    %v782 = vadd.f32 %v780, %v781
    %v783 = vrot.slane %v782, 1
    %v784 = vadd.f32 %v782, %v783
    %v785 = vrot.slane %v749, 4
    %v786 = vadd.f32 %v749, %v785
    %v787 = vrot.slane %v786, 2
    %v788 = vadd.f32 %v786, %v787
    %v789 = vrot.slane %v788, 1
    %v790 = vadd.f32 %v788, %v789
    %v791 = vrot.slane %v750, 4
    %v792 = vadd.f32 %v750, %v791
    %v793 = vrot.slane %v792, 2
    %v794 = vadd.f32 %v792, %v793
    %v795 = vrot.slane %v794, 1
    %v796 = vadd.f32 %v794, %v795
    %v797 = vrot.slane %v751, 4
    %v798 = vadd.f32 %v751, %v797
    %v799 = vrot.slane %v798, 2
    %v800 = vadd.f32 %v798, %v799
    %v801 = vrot.slane %v800, 1
    %v802 = vadd.f32 %v800, %v801
    %v803 = vrot.slane %v752, 4
    %v804 = vadd.f32 %v752, %v803
    %v805 = vrot.slane %v804, 2
    %v806 = vadd.f32 %v804, %v805
    %v807 = vrot.slane %v806, 1
    %v808 = vadd.f32 %v806, %v807
    %v809 = vrot.slane %v753, 4
    %v810 = vadd.f32 %v753, %v809
    %v811 = vrot.slane %v810, 2
    %v812 = vadd.f32 %v810, %v811
    %v813 = vrot.slane %v812, 1
    %v814 = vadd.f32 %v812, %v813
    %v815 = vrot.slane %v754, 4
    %v816 = vadd.f32 %v754, %v815
    %v817 = vrot.slane %v816, 2
    %v818 = vadd.f32 %v816, %v817
    %v819 = vrot.slane %v818, 1
    %v820 = vadd.f32 %v818, %v819
    %v821 = vrot.slane %v755, 4
    %v822 = vadd.f32 %v755, %v821
    %v823 = vrot.slane %v822, 2
    %v824 = vadd.f32 %v822, %v823
    %v825 = vrot.slane %v824, 1
    %v826 = vadd.f32 %v824, %v825
    %v827 = vrot.slane %v756, 4
    %v828 = vadd.f32 %v756, %v827
    %v829 = vrot.slane %v828, 2
    %v830 = vadd.f32 %v828, %v829
    %v831 = vrot.slane %v830, 1
    %v832 = vadd.f32 %v830, %v831
    %v833 = vrot.slane %v757, 4
    %v834 = vadd.f32 %v757, %v833
    %v835 = vrot.slane %v834, 2
    %v836 = vadd.f32 %v834, %v835
    %v837 = vrot.slane %v836, 1
    %v838 = vadd.f32 %v836, %v837
    %v839 = vrot.slane %v758, 4
    %v840 = vadd.f32 %v758, %v839
    %v841 = vrot.slane %v840, 2
    %v842 = vadd.f32 %v840, %v841
    %v843 = vrot.slane %v842, 1
    %v844 = vadd.f32 %v842, %v843
    %v845 = vrot.slane %v759, 4
    %v846 = vadd.f32 %v759, %v845
    %v847 = vrot.slane %v846, 2
    %v848 = vadd.f32 %v846, %v847
    %v849 = vrot.slane %v848, 1
    %v850 = vadd.f32 %v848, %v849
    %v851 = vrot.slane %v760, 4
    %v852 = vadd.f32 %v760, %v851
    %v853 = vrot.slane %v852, 2
    %v854 = vadd.f32 %v852, %v853
    %v855 = vrot.slane %v854, 1
    %v856 = vadd.f32 %v854, %v855
    %vm873 = vcmask 1041409
    %v874 = vsel %vm873, %v772, %v766
    %vm875 = vcmask 1042434
    %v876 = vsel %vm875, %v778, %v874
    %vm877 = vcmask 1043459
    %v878 = vsel %vm877, %v784, %v876
    %vm879 = vcmask 1044484
    %v880 = vsel %vm879, %v790, %v878
    %vm881 = vcmask 1045509
    %v882 = vsel %vm881, %v796, %v880
    %vm883 = vcmask 1046534
    %v884 = vsel %vm883, %v802, %v882
    %vm885 = vcmask 1047559
    %v886 = vsel %vm885, %v808, %v884
    %v887 = vsel %vm873, %v820, %v814
    %v888 = vsel %vm875, %v826, %v887
    %v889 = vsel %vm877, %v832, %v888
    %v890 = vsel %vm879, %v838, %v889
    %v891 = vsel %vm881, %v844, %v890
    %v892 = vsel %vm883, %v850, %v891
    %v893 = vsel %vm885, %v856, %v892
    %896 = vst [vmem:[#allocation6] sm:$0xff] %v886
    %897 = vst [vmem:[#allocation6 + $0x8] sm:$0xff] %v893
    // Predicated region
    $region30: #{tpu_custom_call.1} parent=1 // pred_check
      _
    $region31: #{tpu_custom_call.1} parent=1 // pred_check_branch
      %899 = sbr.rel (0) target = $region33
    $region32: #{tpu_custom_call.1} parent=1 // pred_region
      %s901 = ssub.s32 256, 256
      %902 = vsyncadd [#allocation5], %s901
      %s903 = sshll.u32 [#allocation6], 4
      %s904 = int_to_ptr.vmem [resolvable:$true] %s903
      %909 = dma.vmem_to_hbm [thread:$0]  %s904, 256, %s6, [#allocation5], 128, 128, 8
    $region33: #{tpu_custom_call.1} parent=1 // pred_fallthru
      _
    // Predicated region
    $region34: #{tpu_custom_call.1} parent=1 // pred_check
      _
    $region35: #{tpu_custom_call.1} parent=1 // pred_check_branch
      %911 = sbr.rel (0) target = $region37
    $region36: #{tpu_custom_call.1} parent=1 // pred_region
      %912 = dma.done [#allocation5], 256
    $region37: #{tpu_custom_call.1} parent=1 // pred_fallthru
      _
    %913 = vsyncpa [#allocation4], 1
    %914 = vsyncpa [#allocation5], 1

</llo_original>
